<compile_context>
chip_gen: v7x
topology: tpu7x:2x2x1
jax: 0.10.0
libtpu: 0.0.40
codegen_flags: <defaults>
</compile_context>

<pallas_src>
import jax
import jax.numpy as jnp
import numpy as np
from jax.experimental import pallas as pl
from jax.experimental.pallas import tpu as pltpu

# ---------------------------------------------------------------------------
# Hyper-parameters consistent with ConvTokenizer.__init__
# ---------------------------------------------------------------------------
B, C = 2, 4                  # batch, channels
N_SEGS = 8                   # == max_segs (positional_encoding add requires it)
SEG_LEN = 16
N_BANDS = 8
D_MODEL = 32
N_FILTERS = [8, 16]
KERNEL_SIZES = [3, 3]
N_STRIDES = [1, 1]           # stride 1 -> padding='same'
POOL_SIZES = [2, 2]          # MaxPool1d(pool, stride=pool//2)
# TODO(synk): nn.Dropout is identity at inference; training-mode dropout not implemented.

assert all(s == 1 for s in N_STRIDES)
assert all(p == 2 for p in POOL_SIZES), "two-tap pool fusion written for pool_size=2"

N_ROWS = B * C * N_SEGS      # 64 rows, processed in a single grid step by default
F1, F2 = N_FILTERS
K1, K2 = KERNEL_SIZES


def _pooled_len(length, pool):
    return (length - pool) // (pool // 2) + 1


L1_CONV = SEG_LEN                               # 16 ('same' conv, stride 1)
L1_POOL = _pooled_len(L1_CONV, POOL_SIZES[0])   # 15
L2_CONV = L1_POOL                               # 15
L2_POOL = _pooled_len(L2_CONV, POOL_SIZES[1])   # 14

LANE = 128                       # lane width used for all padded blocks
H1 = 128                         # per-tap lane width, conv block 1 (>= L1_POOL*F1 + 1)
H2 = 256                         # per-tap lane width, conv block 2 (>= L2_POOL*F2)
OUT_LANES = 128                  # lane-dense output slab; wrapper slices [:, :D_MODEL]
BIAS1_ROW = SEG_LEN              # 16: ones lane carried in the padded raw series
BIAS2_COL = L1_POOL * F1         # 120: ones lane re-planted into p1 by the block-1 matrix
DATA_W = 6 * LANE                # [x | S | mask | pos+b_lin | mask_enc | power_mask_enc]

assert L1_POOL * F1 + 1 <= H1 and BIAS1_ROW < LANE
assert L2_POOL * F2 <= H2 and BIAS2_COL < LANE
assert L1_CONV * 1 <= LANE and L2_CONV * F1 <= LANE
assert SEG_LEN < LANE and N_BANDS < LANE and D_MODEL <= OUT_LANES


# ---------------------------------------------------------------------------
# Wrapper-side weight re-layout: Conv1d('same') + bias + both MaxPool taps as a
# dense block-Toeplitz matmul (time-major flat layout, flat index = t*F + f).
# ---------------------------------------------------------------------------
def _conv_taps(w, b, l_in, l_pool, in_rows, bias_row, shift):
    """Dense A (in_rows, l_pool*F): for a time-major-flat row vector v with
    v[t*Cin + c] = inp[t, c] (t < l_in), v[bias_row] = 1, zeros elsewhere:
      (v @ A)[t*F + f] = Conv1d_same(inp, w)[t + shift, f] + b[f],  t in [0, l_pool)."""
    f_out, cin, k_sz = w.shape
    pad = (k_sz - 1) // 2
    r = jnp.arange(in_rows)
    t_in, c_in = r // cin, r % cin
    jj = jnp.arange(l_pool * f_out)
    t_out, f = jj // f_out + shift, jj % f_out
    k = t_in[:, None] - t_out[None, :] + pad
    valid = (k >= 0) & (k < k_sz) & (r[:, None] < l_in * cin)
    vals = w[f[None, :], c_in[:, None], jnp.clip(k, 0, k_sz - 1)]
    mat = jnp.where(valid, vals, 0.0).astype(jnp.float32)
    return mat.at[bias_row, :].set(b[f].astype(jnp.float32))


def _conv_block_matrix(w, b, l_in, l_pool, in_rows, bias_row, half_lanes, plant_one_col=None):
    """(in_rows, 2*half_lanes) matrix emitting both MaxPool1d(2, stride 1) taps of a
    'same' Conv1d (+bias) in 128-aligned halves; optionally plants a 1.0 passthrough
    column (the bias lane for the next block) in the first half."""
    f_out = w.shape[0]
    cols = l_pool * f_out
    halves = []
    for shift in (0, 1):
        h = jnp.zeros((in_rows, half_lanes), jnp.float32)
        h = h.at[:, :cols].set(_conv_taps(w, b, l_in, l_pool, in_rows, bias_row, shift))
        if shift == 0 and plant_one_col is not None:
            h = h.at[bias_row, plant_one_col].set(1.0)
        halves.append(h)
    return jnp.concatenate(halves, axis=-1)


# ---------------------------------------------------------------------------
# Pallas kernel
# ---------------------------------------------------------------------------
def conv_tokenizer_kernel(data_ref, w12_ref, w3_ref, out_ref):
    data = data_ref[...]
    x     = data[:, 0 * LANE:1 * LANE]   # raw series (cols 0..15) + ones bias lane (col 16)
    s     = data[:, 1 * LANE:2 * LANE]   # band powers (cols 0..7), -1e30 filler elsewhere
    m     = data[:, 2 * LANE:3 * LANE]   # mask, broadcast to all 128 lanes
    posb  = data[:, 3 * LANE:4 * LANE]   # positional encoding + linear bias (lane-padded)
    menc  = data[:, 4 * LANE:5 * LANE]   # mask_encoding (lane-padded; bias lane kept at 1)
    pmenc = data[:, 5 * LANE:6 * LANE]   # power_mask_encoding (lane-padded)
    w12 = w12_ref[...]

    # exact linear mask blend of the raw series (bias lane stays at 1 for any m)
    xb = x * (1.0 - m) + menc * m

    # conv block 1: 'same' Conv1d + bias + ReLU + MaxPool1d(2, stride 1).
    # One (rows,128)@(128,256) matmul emits both pool taps; bias rides the ones lane.
    y1 = jnp.dot(xb, w12[:, :2 * H1], preferred_element_type=jnp.float32)
    y1 = jnp.maximum(y1, 0.0)
    p1 = jnp.maximum(y1[:, :H1], y1[:, H1:])      # (rows,128): 120 pooled cols + bias lane + 0s

    # conv block 2 (Cin = F1 folded into the block-Toeplitz matrix)
    y2 = jnp.dot(p1, w12[:, 2 * H1:], preferred_element_type=jnp.float32)
    y2 = jnp.maximum(y2, 0.0)
    p2 = jnp.maximum(y2[:, :H2], y2[:, H2:])      # (rows,256): 224 pooled cols + 0s

    # band-power softmax; filler lanes (-1e30) exp to 0, so full-row reduces are exact.
    smax = jnp.max(s, axis=-1, keepdims=True)
    e = jnp.exp(s - smax)
    p_soft = e / jnp.sum(e, axis=-1, keepdims=True)   # exact divide (correctness fix)
    band_in = p_soft * (1.0 - m)                      # (1-mask) blend folded into the weights

    # time-mean + Linear + band projection in a single (rows,384)@(384,128) matmul
    feat = jnp.concatenate([p2, band_in], axis=-1)
    t = jnp.dot(feat, w3_ref[...], preferred_element_type=jnp.float32)

    # + mask * power_mask_encoding + (positional_encoding + linear bias)
    out_ref[...] = (t + m * pmenc + posb).astype(out_ref.dtype)


# ---------------------------------------------------------------------------
# Forward wrapper
# ---------------------------------------------------------------------------
def conv_tokenizer_forward(X, S, mask, params, row_block=None):
    b, c, n_segs, seg_len = X.shape
    n_rows = b * c * n_segs
    if row_block is None:
        row_block = n_rows       # one grid step (v5e/v6e); use n_rows // 2 on v7x (2 TCs)
    assert n_rows % row_block == 0 and row_block % 8 == 0

    x_flat = X.reshape(n_rows, seg_len).astype(jnp.float32)
    s_flat = S.reshape(n_rows, N_BANDS).astype(jnp.float32)
    m_col = mask.reshape(n_rows, 1).astype(jnp.float32)

    # per-row data slab (N, 768): 6 lane-aligned 128-wide blocks -> one DMA
    zrow = jnp.zeros((n_rows, LANE), jnp.float32)
    x_pad = zrow.at[:, :seg_len].set(x_flat).at[:, BIAS1_ROW].set(1.0)
    s_pad = jnp.full((n_rows, LANE), -1e30, jnp.float32).at[:, :N_BANDS].set(s_flat)
    m_pad = jnp.broadcast_to(m_col, (n_rows, LANE))
    posb = zrow.at[:, :D_MODEL].set(
        jnp.tile(params["positional_encoding"] + params["b_lin"][None, :], (b * c, 1)))
    menc_row = (jnp.zeros((LANE,), jnp.float32)
                .at[:seg_len].set(params["mask_encoding"]).at[BIAS1_ROW].set(1.0))
    pmenc_row = jnp.zeros((LANE,), jnp.float32).at[:D_MODEL].set(params["power_mask_encoding"])
    data = jnp.concatenate(
        [x_pad, s_pad, m_pad, posb,
         jnp.broadcast_to(menc_row[None, :], (n_rows, LANE)),
         jnp.broadcast_to(pmenc_row[None, :], (n_rows, LANE))], axis=-1)      # (N, 768)

    # conv weights: both blocks' two-tap block-Toeplitz matrices in one slab -> one DMA
    w1c = _conv_block_matrix(params["w1"], params["b1"], L1_CONV, L1_POOL,
                             in_rows=LANE, bias_row=BIAS1_ROW, half_lanes=H1,
                             plant_one_col=BIAS2_COL)                          # (128, 256)
    w2c = _conv_block_matrix(params["w2"], params["b2"], L2_CONV, L2_POOL,
                             in_rows=LANE, bias_row=BIAS2_COL, half_lanes=H2)  # (128, 512)
    w12 = jnp.concatenate([w1c, w2c], axis=-1)                                 # (128, 768)

    # time-mean + Linear (bias folded into posb) stacked with the band projection
    w3 = jnp.zeros((H2 + LANE, OUT_LANES), jnp.float32)
    lin_rows = jnp.tile(params["w_lin"].T, (L2_POOL, 1)) / float(L2_POOL)      # (224, 32)
    w3 = w3.at[:L2_POOL * F2, :D_MODEL].set(lin_rows)
    w3 = w3.at[H2:H2 + N_BANDS, :D_MODEL].set(params["band_encoding"])         # (384, 128)

    out_flat = pl.pallas_call(
        conv_tokenizer_kernel,
        out_shape=jax.ShapeDtypeStruct((n_rows, OUT_LANES), jnp.float32),
        grid=(n_rows // row_block,),
        in_specs=[pl.BlockSpec((row_block, DATA_W), lambda i: (i, 0)),
                  pl.BlockSpec(w12.shape, lambda i: (0, 0)),
                  pl.BlockSpec(w3.shape, lambda i: (0, 0))],
        out_specs=pl.BlockSpec((row_block, OUT_LANES), lambda i: (i, 0)),
        compiler_params=pltpu.CompilerParams(dimension_semantics=("parallel",)),
    )(data, w12, w3)

    return out_flat[:, :D_MODEL].reshape(b, c, n_segs, D_MODEL)


# ---------------------------------------------------------------------------
# Deterministic parameter init (mirrors shapes of the PyTorch module)
# ---------------------------------------------------------------------------
def init_params(key):
    ks = jax.random.split(key, 8)
    return {
        "mask_encoding": jnp.zeros((SEG_LEN,), jnp.float32),
        "power_mask_encoding": jnp.zeros((D_MODEL,), jnp.float32),
        "band_encoding": jax.random.truncated_normal(ks[0], -2.0, 2.0, (N_BANDS, D_MODEL), jnp.float32),
        "positional_encoding": jax.random.truncated_normal(ks[1], -2.0, 2.0, (N_SEGS, D_MODEL), jnp.float32),
        "w1": jax.random.uniform(ks[2], (F1, 1, K1), jnp.float32, -1.0, 1.0) / np.sqrt(1 * K1),
        "b1": jax.random.uniform(ks[3], (F1,), jnp.float32, -1.0, 1.0) / np.sqrt(1 * K1),
        "w2": jax.random.uniform(ks[4], (F2, F1, K2), jnp.float32, -1.0, 1.0) / np.sqrt(F1 * K2),
        "b2": jax.random.uniform(ks[5], (F2,), jnp.float32, -1.0, 1.0) / np.sqrt(F1 * K2),
        "w_lin": 0.02 * jax.random.normal(ks[6], (D_MODEL, F2), jnp.float32),
        "b_lin": jnp.zeros((D_MODEL,), jnp.float32),
    }


# ---------------------------------------------------------------------------
# Pure-JAX reference (same semantics as the PyTorch forward, eval mode)
# ---------------------------------------------------------------------------
def reference_forward(X, S, mask, p):
    mdt = mask[..., None].astype(X.dtype)
    Xm = X * (1.0 - mdt) + p["mask_encoding"][None, None, None, :] * mdt
    x = Xm.reshape(-1, 1, Xm.shape[-1])                         # (N, 1, L)  NCW

    def block(x, w, b, pool):
        y = jax.lax.conv_general_dilated(
            x, w, window_strides=(1,), padding="SAME",
            dimension_numbers=("NCH", "OIH", "NCH"))
        y = y + b[None, :, None]
        y = jnp.maximum(y, 0.0)
        y = jax.lax.reduce_window(y, -jnp.inf, jax.lax.max,
                                  (1, 1, pool), (1, 1, pool // 2), "VALID")
        return y

    y = block(x, p["w1"], p["b1"], POOL_SIZES[0])
    y = block(y, p["w2"], p["b2"], POOL_SIZES[1])
    feat = jnp.mean(y, axis=-1)
    t_x = feat @ p["w_lin"].T + p["b_lin"]
    T_x = t_x.reshape(*X.shape[:-1], -1)

    T_s = jnp.einsum("hijk,kl->hijl", jax.nn.softmax(S, axis=-1), p["band_encoding"])
    T_s = T_s * (1.0 - mdt) + p["power_mask_encoding"][None, None, None, :] * mdt
    return T_x + T_s + p["positional_encoding"]


# ---------------------------------------------------------------------------
if __name__ == "__main__":
    key = jax.random.PRNGKey(0)
    k_x, k_s, k_m, k_p = jax.random.split(key, 4)

    X = jax.random.normal(k_x, (B, C, N_SEGS, SEG_LEN), jnp.float32)
    S = jax.random.normal(k_s, (B, C, N_SEGS, N_BANDS), jnp.float32)
    mask = (jax.random.uniform(k_m, (B, C, N_SEGS)) > 0.5).astype(jnp.float32)
    params = init_params(k_p)

    out = jax.block_until_ready(conv_tokenizer_forward(X, S, mask, params))
    ref = jax.block_until_ready(reference_forward(X, S, mask, params))

    assert out.shape == (B, C, N_SEGS, D_MODEL)
    # All in-kernel math is exact f32 (no approximate reciprocal); the small slack only
    # covers MXU f32 accumulation-order differences vs. the XLA reference.
    np.testing.assert_allclose(np.asarray(out), np.asarray(ref), rtol=2e-3, atol=2e-3)

    print("KERNEL_OK")
</pallas_src>

<mosaic_0001>
module attributes {stable_mosaic.version = 11 : i64} {
  func.func @conv_tokenizer_kernel(%arg0: i32, %arg1: memref<64x768xf32, #tpu.memory_space<vmem>>, %arg2: memref<128x768xf32, #tpu.memory_space<vmem>>, %arg3: memref<384x128xf32, #tpu.memory_space<vmem>>, %arg4: memref<64x128xf32, #tpu.memory_space<vmem>>) attributes {dimension_semantics = [#tpu.dimension_semantics<parallel>], iteration_bounds = array<i64: 1>, scalar_prefetch = 0 : i64, scratch_operands = 0 : i64, tpu.core_type = #tpu.core_type<tc>, window_params = [{transform_indices = @transform_0, window_bounds = array<i64: 64, 768>}, {pipeline_mode = #tpu.pipeline_mode<synchronous>, transform_indices = @transform_1, window_bounds = array<i64: 128, 768>}, {pipeline_mode = #tpu.pipeline_mode<synchronous>, transform_indices = @transform_2, window_bounds = array<i64: 384, 128>}, {transform_indices = @transform_3, window_bounds = array<i64: 64, 128>}]} {
    %c0 = arith.constant 0 : index
    %c0_0 = arith.constant 0 : index
    %0 = vector.load %arg1[%c0, %c0_0] : memref<64x768xf32, #tpu.memory_space<vmem>>, vector<64x768xf32>
    %1 = vector.extract_strided_slice %0 {offsets = [0, 0], sizes = [64, 128], strides = [1, 1]} : vector<64x768xf32> to vector<64x128xf32>
    %2 = vector.extract_strided_slice %0 {offsets = [0, 128], sizes = [64, 128], strides = [1, 1]} : vector<64x768xf32> to vector<64x128xf32>
    %3 = vector.extract_strided_slice %0 {offsets = [0, 256], sizes = [64, 128], strides = [1, 1]} : vector<64x768xf32> to vector<64x128xf32>
    %4 = vector.extract_strided_slice %0 {offsets = [0, 384], sizes = [64, 128], strides = [1, 1]} : vector<64x768xf32> to vector<64x128xf32>
    %5 = vector.extract_strided_slice %0 {offsets = [0, 512], sizes = [64, 128], strides = [1, 1]} : vector<64x768xf32> to vector<64x128xf32>
    %6 = vector.extract_strided_slice %0 {offsets = [0, 640], sizes = [64, 128], strides = [1, 1]} : vector<64x768xf32> to vector<64x128xf32>
    %c0_1 = arith.constant 0 : index
    %c0_2 = arith.constant 0 : index
    %7 = vector.load %arg2[%c0_1, %c0_2] : memref<128x768xf32, #tpu.memory_space<vmem>>, vector<128x768xf32>
    %cst = arith.constant 1.000000e+00 : f32
    %8 = vector.broadcast %cst : f32 to vector<64x128xf32>
    %9 = arith.subf %8, %3 : vector<64x128xf32>
    %10 = arith.mulf %1, %9 : vector<64x128xf32>
    %11 = arith.mulf %5, %3 : vector<64x128xf32>
    %12 = arith.addf %10, %11 : vector<64x128xf32>
    %13 = vector.extract_strided_slice %7 {offsets = [0, 0], sizes = [128, 256], strides = [1, 1]} : vector<128x768xf32> to vector<128x256xf32>
    %cst_3 = arith.constant dense<0.000000e+00> : vector<64x256xf32>
    %14 = tpu.matmul %12, %13, %cst_3 {dimension_numbers = #tpu.dot_dimension_numbers<[1], [0], [0], [1], [0, 0, 1, 1], [], []>} : vector<64x128xf32>, vector<128x256xf32>, vector<64x256xf32> -> vector<64x256xf32>
    %cst_4 = arith.constant 0.000000e+00 : f32
    %15 = vector.broadcast %cst_4 : f32 to vector<64x256xf32>
    %16 = arith.maximumf %14, %15 : vector<64x256xf32>
    %17 = vector.extract_strided_slice %16 {offsets = [0, 0], sizes = [64, 128], strides = [1, 1]} : vector<64x256xf32> to vector<64x128xf32>
    %18 = vector.extract_strided_slice %16 {offsets = [0, 128], sizes = [64, 128], strides = [1, 1]} : vector<64x256xf32> to vector<64x128xf32>
    %19 = arith.maximumf %17, %18 : vector<64x128xf32>
    %20 = vector.extract_strided_slice %7 {offsets = [0, 256], sizes = [128, 512], strides = [1, 1]} : vector<128x768xf32> to vector<128x512xf32>
    %cst_5 = arith.constant dense<0.000000e+00> : vector<64x512xf32>
    %21 = tpu.matmul %19, %20, %cst_5 {dimension_numbers = #tpu.dot_dimension_numbers<[1], [0], [0], [1], [0, 0, 1, 1], [], []>} : vector<64x128xf32>, vector<128x512xf32>, vector<64x512xf32> -> vector<64x512xf32>
    %cst_6 = arith.constant 0.000000e+00 : f32
    %22 = vector.broadcast %cst_6 : f32 to vector<64x512xf32>
    %23 = arith.maximumf %21, %22 : vector<64x512xf32>
    %24 = vector.extract_strided_slice %23 {offsets = [0, 0], sizes = [64, 256], strides = [1, 1]} : vector<64x512xf32> to vector<64x256xf32>
    %25 = vector.extract_strided_slice %23 {offsets = [0, 256], sizes = [64, 256], strides = [1, 1]} : vector<64x512xf32> to vector<64x256xf32>
    %26 = arith.maximumf %24, %25 : vector<64x256xf32>
    %cst_7 = arith.constant dense<0xFF800000> : vector<64xf32>
    %27 = vector.multi_reduction <maximumf>, %2, %cst_7 [1] : vector<64x128xf32> to vector<64xf32>
    %28 = vector.shape_cast %27 : vector<64xf32> to vector<64x1xf32>
    %29 = vector.broadcast %28 : vector<64x1xf32> to vector<64x128xf32>
    %30 = arith.subf %2, %29 : vector<64x128xf32>
    %31 = math.exp %30 : vector<64x128xf32>
    %cst_8 = arith.constant dense<0.000000e+00> : vector<64xf32>
    %32 = vector.multi_reduction <add>, %31, %cst_8 [1] : vector<64x128xf32> to vector<64xf32>
    %33 = vector.shape_cast %32 : vector<64xf32> to vector<64x1xf32>
    %34 = vector.broadcast %33 : vector<64x1xf32> to vector<64x128xf32>
    %35 = arith.divf %31, %34 : vector<64x128xf32>
    %cst_9 = arith.constant 1.000000e+00 : f32
    %36 = vector.broadcast %cst_9 : f32 to vector<64x128xf32>
    %37 = arith.subf %36, %3 : vector<64x128xf32>
    %38 = arith.mulf %35, %37 : vector<64x128xf32>
    %39 = tpu.concatenate %26, %38 in 1 : vector<64x256xf32>, vector<64x128xf32> -> vector<64x384xf32>
    %c0_10 = arith.constant 0 : index
    %c0_11 = arith.constant 0 : index
    %40 = vector.load %arg3[%c0_10, %c0_11] : memref<384x128xf32, #tpu.memory_space<vmem>>, vector<384x128xf32>
    %cst_12 = arith.constant dense<0.000000e+00> : vector<64x128xf32>
    %41 = tpu.matmul %39, %40, %cst_12 {dimension_numbers = #tpu.dot_dimension_numbers<[1], [0], [0], [1], [0, 0, 1, 1], [], []>} : vector<64x384xf32>, vector<384x128xf32>, vector<64x128xf32> -> vector<64x128xf32>
    %42 = arith.mulf %3, %6 : vector<64x128xf32>
    %43 = arith.addf %41, %42 : vector<64x128xf32>
    %44 = arith.addf %43, %4 : vector<64x128xf32>
    %c0_13 = arith.constant 0 : index
    %c0_14 = arith.constant 0 : index
    %45 = vector.load %arg4[%c0_13, %c0_14] : memref<64x128xf32, #tpu.memory_space<vmem>>, vector<64x128xf32>
    tpu.vector_store %arg4[%c0_13, %c0_14], %44 {strides = array<i32>} : memref<64x128xf32, #tpu.memory_space<vmem>>, vector<64x128xf32>,
    return
  }
  func.func @transform_0(%arg0: i32) -> (i32, i32) {
    %c0_i32 = arith.constant 0 : i32
    %c0_i32_0 = arith.constant 0 : i32
    return %arg0, %c0_i32 : i32, i32
  }
  func.func @transform_1(%arg0: i32) -> (i32, i32) {
    %c0_i32 = arith.constant 0 : i32
    %c0_i32_0 = arith.constant 0 : i32
    %c0_i32_1 = arith.constant 0 : i32
    return %c0_i32, %c0_i32_0 : i32, i32
  }
  func.func @transform_2(%arg0: i32) -> (i32, i32) {
    %c0_i32 = arith.constant 0 : i32
    %c0_i32_0 = arith.constant 0 : i32
    %c0_i32_1 = arith.constant 0 : i32
    return %c0_i32, %c0_i32_0 : i32, i32
  }
  func.func @transform_3(%arg0: i32) -> (i32, i32) {
    %c0_i32 = arith.constant 0 : i32
    %c0_i32_0 = arith.constant 0 : i32
    return %arg0, %c0_i32 : i32, i32
  }
}

</mosaic_0001>

<llo_original>
// kernel: tpu_custom_call.1
$region0: #{tpu_custom_call.1}
  #allocation0 [shape = 'u32[]', space=smem, size = 0x4, offset = 0x4, fixed_abs, tag = 'smem constant byte address 0x4 - core index']
  #allocation1 [shape = 'u32[144,128]{1,0:T(1,128)}', space=vmem, size = 0x12000, scoped, tag = 'internal scratch']
  %s0 = inlined_call_operand.hbm [shape: f32[64,768], index: 0, kind: input, shape index: {}]
  %s1 = inlined_call_operand.hbm [shape: f32[128,768], index: 1, kind: input, shape index: {}]
  %s2 = inlined_call_operand.hbm [shape: f32[384,128], index: 2, kind: input, shape index: {}]
  %s3 = inlined_call_operand.hbm [shape: f32[64,128], index: 3, kind: output, shape index: {}]
  %s4 = sld [smem:[#allocation0]]
  $region34: #{tpu_custom_call.1} parent=0
    _
  %s6 = ssub.s32 1, %s4
  %s7 = scalar_select 0, %s6, %s4
  $region1: #{tpu_custom_call.1} parent=0
    #allocation2 [shape = 'u8[196608]{0}', space=vmem, size = 0x30000, scoped, tag = 'input window, operand 0, single buffered']
    #allocation3 [shape = 's32[1]{0}', space=sflag, size = 0x4, scoped, tag = 'scoped memory for tpu_custom_call.1']
    #allocation4 [shape = 's32[1]{0}', space=sflag, size = 0x4, scoped, tag = 'scoped memory for tpu_custom_call.1']
    #allocation5 [shape = 'u8[393216]{0}', space=vmem, size = 0x60000, scoped, tag = 'input window, operand 1, single buffered']
    #allocation6 [shape = 's32[1]{0}', space=sflag, size = 0x4, scoped, tag = 'scoped memory for tpu_custom_call.1']
    #allocation7 [shape = 'u8[196608]{0}', space=vmem, size = 0x30000, scoped, tag = 'input window, operand 2, single buffered']
    #allocation8 [shape = 'u8[32768]{0}', space=vmem, size = 0x8000, scoped, tag = 'output window, operand 0, single buffered']
    %8 = vsyncpa [#allocation3], 0
    %9 = vsyncpa [#allocation6], 0
    %10 = vsyncpa [#allocation4], 0
    // Predicated region
    $region2: #{tpu_custom_call.1} parent=1 // pred_check
      _
    $region3: #{tpu_custom_call.1} parent=1 // pred_check_branch
      %12 = sbr.rel (0) target = $region5
    $region4: #{tpu_custom_call.1} parent=1 // pred_region
      %s14 = ssub.s32 6144, 6144
      %15 = vsyncadd [#allocation3], %s14
      %s16 = sshll.u32 [#allocation2], 4
      %s17 = int_to_ptr.vmem [resolvable:$true] %s16
      %22 = dma.hbm_to_vmem [thread:$0]  %s0, 6144, %s17, [#allocation3], 768, 768, 48
    $region5: #{tpu_custom_call.1} parent=1 // pred_fallthru
      _
    // Predicated region
    $region6: #{tpu_custom_call.1} parent=1 // pred_check
      _
    $region7: #{tpu_custom_call.1} parent=1 // pred_check_branch
      %24 = sbr.rel (0) target = $region9
    $region8: #{tpu_custom_call.1} parent=1 // pred_region
      %s26 = ssub.s32 12288, 12288
      %27 = vsyncadd [#allocation6], %s26
      %s28 = sshll.u32 [#allocation5], 4
      %s29 = int_to_ptr.vmem [resolvable:$true] %s28
      %34 = dma.hbm_to_vmem [thread:$0]  %s1, 12288, %s29, [#allocation6], 768, 768, 48
    $region9: #{tpu_custom_call.1} parent=1 // pred_fallthru
      _
    // Predicated region
    $region10: #{tpu_custom_call.1} parent=1 // pred_check
      _
    $region11: #{tpu_custom_call.1} parent=1 // pred_check_branch
      %36 = sbr.rel (0) target = $region13
    $region12: #{tpu_custom_call.1} parent=1 // pred_region
      %s38 = ssub.s32 6144, 6144
      %39 = vsyncadd [#allocation6], %s38
      %s40 = sshll.u32 [#allocation7], 4
      %s41 = int_to_ptr.vmem [resolvable:$true] %s40
      %46 = dma.hbm_to_vmem [thread:$0]  %s2, 6144, %s41, [#allocation6], 128, 128, 8
    $region13: #{tpu_custom_call.1} parent=1 // pred_fallthru
      _
    // Predicated region
    $region14: #{tpu_custom_call.1} parent=1 // pred_check
      _
    $region15: #{tpu_custom_call.1} parent=1 // pred_check_branch
      %48 = sbr.rel (0) target = $region17
    $region16: #{tpu_custom_call.1} parent=1 // pred_region
      %49 = dma.done [#allocation3], 6144
    $region17: #{tpu_custom_call.1} parent=1 // pred_fallthru
      _
    // Predicated region
    $region18: #{tpu_custom_call.1} parent=1 // pred_check
      _
    $region19: #{tpu_custom_call.1} parent=1 // pred_check_branch
      %51 = sbr.rel (0) target = $region21
    $region20: #{tpu_custom_call.1} parent=1 // pred_region
      %52 = dma.done [#allocation6], 12288
    $region21: #{tpu_custom_call.1} parent=1 // pred_fallthru
      _
    // Predicated region
    $region22: #{tpu_custom_call.1} parent=1 // pred_check
      _
    $region23: #{tpu_custom_call.1} parent=1 // pred_check_branch
      %54 = sbr.rel (0) target = $region25
    $region24: #{tpu_custom_call.1} parent=1 // pred_region
      %55 = dma.done [#allocation6], 6144
    $region25: #{tpu_custom_call.1} parent=1 // pred_fallthru
      _
    %v56 = vld [vmem:[#allocation2] sm:$0xff]
    %v57 = vld [vmem:[#allocation2 + $0x8] sm:$0xff]
    %v58 = vld [vmem:[#allocation2 + $0x10] sm:$0xff]
    %v59 = vld [vmem:[#allocation2 + $0x18] sm:$0xff]
    %v60 = vld [vmem:[#allocation2 + $0x20] sm:$0xff]
    %v61 = vld [vmem:[#allocation2 + $0x28] sm:$0xff]
    %v62 = vld [vmem:[#allocation2 + $0x30] sm:$0xff]
    %v63 = vld [vmem:[#allocation2 + $0x38] sm:$0xff]
    %v64 = vld [vmem:[#allocation2 + $0x40] sm:$0xff]
    %v65 = vld [vmem:[#allocation2 + $0x48] sm:$0xff]
    %v66 = vld [vmem:[#allocation2 + $0x50] sm:$0xff]
    %v67 = vld [vmem:[#allocation2 + $0x58] sm:$0xff]
    %v68 = vld [vmem:[#allocation2 + $0x60] sm:$0xff]
    %v69 = vld [vmem:[#allocation2 + $0x68] sm:$0xff]
    %v70 = vld [vmem:[#allocation2 + $0x70] sm:$0xff]
    %v71 = vld [vmem:[#allocation2 + $0x78] sm:$0xff]
    %v72 = vld [vmem:[#allocation2 + $0x80] sm:$0xff]
    %v73 = vld [vmem:[#allocation2 + $0x88] sm:$0xff]
    %v74 = vld [vmem:[#allocation2 + $0x90] sm:$0xff]
    %v75 = vld [vmem:[#allocation2 + $0x98] sm:$0xff]
    %v76 = vld [vmem:[#allocation2 + $0xa0] sm:$0xff]
    %v77 = vld [vmem:[#allocation2 + $0xa8] sm:$0xff]
    %v78 = vld [vmem:[#allocation2 + $0xb0] sm:$0xff]
    %v79 = vld [vmem:[#allocation2 + $0xb8] sm:$0xff]
    %v80 = vld [vmem:[#allocation2 + $0xc0] sm:$0xff]
    %v81 = vld [vmem:[#allocation2 + $0xc8] sm:$0xff]
    %v82 = vld [vmem:[#allocation2 + $0xd0] sm:$0xff]
    %v83 = vld [vmem:[#allocation2 + $0xd8] sm:$0xff]
    %v84 = vld [vmem:[#allocation2 + $0xe0] sm:$0xff]
    %v85 = vld [vmem:[#allocation2 + $0xe8] sm:$0xff]
    %v86 = vld [vmem:[#allocation2 + $0xf0] sm:$0xff]
    %v87 = vld [vmem:[#allocation2 + $0xf8] sm:$0xff]
    %v88 = vld [vmem:[#allocation2 + $0x100] sm:$0xff]
    %v89 = vld [vmem:[#allocation2 + $0x108] sm:$0xff]
    %v90 = vld [vmem:[#allocation2 + $0x110] sm:$0xff]
    %v91 = vld [vmem:[#allocation2 + $0x118] sm:$0xff]
    %v92 = vld [vmem:[#allocation2 + $0x120] sm:$0xff]
    %v93 = vld [vmem:[#allocation2 + $0x128] sm:$0xff]
    %v94 = vld [vmem:[#allocation2 + $0x130] sm:$0xff]
    %v95 = vld [vmem:[#allocation2 + $0x138] sm:$0xff]
    %v96 = vld [vmem:[#allocation2 + $0x140] sm:$0xff]
    %v97 = vld [vmem:[#allocation2 + $0x148] sm:$0xff]
    %v98 = vld [vmem:[#allocation2 + $0x150] sm:$0xff]
    %v99 = vld [vmem:[#allocation2 + $0x158] sm:$0xff]
    %v100 = vld [vmem:[#allocation2 + $0x160] sm:$0xff]
    %v101 = vld [vmem:[#allocation2 + $0x168] sm:$0xff]
    %v102 = vld [vmem:[#allocation2 + $0x170] sm:$0xff]
    %v103 = vld [vmem:[#allocation2 + $0x178] sm:$0xff]
    %v104 = vld [vmem:[#allocation5] sm:$0xff]
    %v105 = vld [vmem:[#allocation5 + $0x8] sm:$0xff]
    %v106 = vld [vmem:[#allocation5 + $0x10] sm:$0xff]
    %v107 = vld [vmem:[#allocation5 + $0x18] sm:$0xff]
    %v108 = vld [vmem:[#allocation5 + $0x20] sm:$0xff]
    %v109 = vld [vmem:[#allocation5 + $0x28] sm:$0xff]
    %v110 = vld [vmem:[#allocation5 + $0x30] sm:$0xff]
    %v111 = vld [vmem:[#allocation5 + $0x38] sm:$0xff]
    %v112 = vld [vmem:[#allocation5 + $0x40] sm:$0xff]
    %v113 = vld [vmem:[#allocation5 + $0x48] sm:$0xff]
    %v114 = vld [vmem:[#allocation5 + $0x50] sm:$0xff]
    %v115 = vld [vmem:[#allocation5 + $0x58] sm:$0xff]
    %v116 = vld [vmem:[#allocation5 + $0x60] sm:$0xff]
    %v117 = vld [vmem:[#allocation5 + $0x68] sm:$0xff]
    %v118 = vld [vmem:[#allocation5 + $0x70] sm:$0xff]
    %v119 = vld [vmem:[#allocation5 + $0x78] sm:$0xff]
    %v120 = vld [vmem:[#allocation5 + $0x80] sm:$0xff]
    %v121 = vld [vmem:[#allocation5 + $0x88] sm:$0xff]
    %v122 = vld [vmem:[#allocation5 + $0x90] sm:$0xff]
    %v123 = vld [vmem:[#allocation5 + $0x98] sm:$0xff]
    %v124 = vld [vmem:[#allocation5 + $0xa0] sm:$0xff]
    %v125 = vld [vmem:[#allocation5 + $0xa8] sm:$0xff]
    %v126 = vld [vmem:[#allocation5 + $0xb0] sm:$0xff]
    %v127 = vld [vmem:[#allocation5 + $0xb8] sm:$0xff]
    %v128 = vld [vmem:[#allocation5 + $0xc0] sm:$0xff]
    %v129 = vld [vmem:[#allocation5 + $0xc8] sm:$0xff]
    %v130 = vld [vmem:[#allocation5 + $0xd0] sm:$0xff]
    %v131 = vld [vmem:[#allocation5 + $0xd8] sm:$0xff]
    %v132 = vld [vmem:[#allocation5 + $0xe0] sm:$0xff]
    %v133 = vld [vmem:[#allocation5 + $0xe8] sm:$0xff]
    %v134 = vld [vmem:[#allocation5 + $0xf0] sm:$0xff]
    %v135 = vld [vmem:[#allocation5 + $0xf8] sm:$0xff]
    %v136 = vld [vmem:[#allocation5 + $0x100] sm:$0xff]
    %v137 = vld [vmem:[#allocation5 + $0x108] sm:$0xff]
    %v138 = vld [vmem:[#allocation5 + $0x110] sm:$0xff]
    %v139 = vld [vmem:[#allocation5 + $0x118] sm:$0xff]
    %v140 = vld [vmem:[#allocation5 + $0x120] sm:$0xff]
    %v141 = vld [vmem:[#allocation5 + $0x128] sm:$0xff]
    %v142 = vld [vmem:[#allocation5 + $0x130] sm:$0xff]
    %v143 = vld [vmem:[#allocation5 + $0x138] sm:$0xff]
    %v144 = vld [vmem:[#allocation5 + $0x140] sm:$0xff]
    %v145 = vld [vmem:[#allocation5 + $0x148] sm:$0xff]
    %v146 = vld [vmem:[#allocation5 + $0x150] sm:$0xff]
    %v147 = vld [vmem:[#allocation5 + $0x158] sm:$0xff]
    %v148 = vld [vmem:[#allocation5 + $0x160] sm:$0xff]
    %v149 = vld [vmem:[#allocation5 + $0x168] sm:$0xff]
    %v150 = vld [vmem:[#allocation5 + $0x170] sm:$0xff]
    %v151 = vld [vmem:[#allocation5 + $0x178] sm:$0xff]
    %v152 = vld [vmem:[#allocation5 + $0x180] sm:$0xff]
    %v153 = vld [vmem:[#allocation5 + $0x188] sm:$0xff]
    %v154 = vld [vmem:[#allocation5 + $0x190] sm:$0xff]
    %v155 = vld [vmem:[#allocation5 + $0x198] sm:$0xff]
    %v156 = vld [vmem:[#allocation5 + $0x1a0] sm:$0xff]
    %v157 = vld [vmem:[#allocation5 + $0x1a8] sm:$0xff]
    %v158 = vld [vmem:[#allocation5 + $0x1b0] sm:$0xff]
    %v159 = vld [vmem:[#allocation5 + $0x1b8] sm:$0xff]
    %v160 = vld [vmem:[#allocation5 + $0x1c0] sm:$0xff]
    %v161 = vld [vmem:[#allocation5 + $0x1c8] sm:$0xff]
    %v162 = vld [vmem:[#allocation5 + $0x1d0] sm:$0xff]
    %v163 = vld [vmem:[#allocation5 + $0x1d8] sm:$0xff]
    %v164 = vld [vmem:[#allocation5 + $0x1e0] sm:$0xff]
    %v165 = vld [vmem:[#allocation5 + $0x1e8] sm:$0xff]
    %v166 = vld [vmem:[#allocation5 + $0x1f0] sm:$0xff]
    %v167 = vld [vmem:[#allocation5 + $0x1f8] sm:$0xff]
    %v168 = vld [vmem:[#allocation5 + $0x200] sm:$0xff]
    %v169 = vld [vmem:[#allocation5 + $0x208] sm:$0xff]
    %v170 = vld [vmem:[#allocation5 + $0x210] sm:$0xff]
    %v171 = vld [vmem:[#allocation5 + $0x218] sm:$0xff]
    %v172 = vld [vmem:[#allocation5 + $0x220] sm:$0xff]
    %v173 = vld [vmem:[#allocation5 + $0x228] sm:$0xff]
    %v174 = vld [vmem:[#allocation5 + $0x230] sm:$0xff]
    %v175 = vld [vmem:[#allocation5 + $0x238] sm:$0xff]
    %v176 = vld [vmem:[#allocation5 + $0x240] sm:$0xff]
    %v177 = vld [vmem:[#allocation5 + $0x248] sm:$0xff]
    %v178 = vld [vmem:[#allocation5 + $0x250] sm:$0xff]
    %v179 = vld [vmem:[#allocation5 + $0x258] sm:$0xff]
    %v180 = vld [vmem:[#allocation5 + $0x260] sm:$0xff]
    %v181 = vld [vmem:[#allocation5 + $0x268] sm:$0xff]
    %v182 = vld [vmem:[#allocation5 + $0x270] sm:$0xff]
    %v183 = vld [vmem:[#allocation5 + $0x278] sm:$0xff]
    %v184 = vld [vmem:[#allocation5 + $0x280] sm:$0xff]
    %v185 = vld [vmem:[#allocation5 + $0x288] sm:$0xff]
    %v186 = vld [vmem:[#allocation5 + $0x290] sm:$0xff]
    %v187 = vld [vmem:[#allocation5 + $0x298] sm:$0xff]
    %v188 = vld [vmem:[#allocation5 + $0x2a0] sm:$0xff]
    %v189 = vld [vmem:[#allocation5 + $0x2a8] sm:$0xff]
    %v190 = vld [vmem:[#allocation5 + $0x2b0] sm:$0xff]
    %v191 = vld [vmem:[#allocation5 + $0x2b8] sm:$0xff]
    %v192 = vld [vmem:[#allocation5 + $0x2c0] sm:$0xff]
    %v193 = vld [vmem:[#allocation5 + $0x2c8] sm:$0xff]
    %v194 = vld [vmem:[#allocation5 + $0x2d0] sm:$0xff]
    %v195 = vld [vmem:[#allocation5 + $0x2d8] sm:$0xff]
    %v196 = vld [vmem:[#allocation5 + $0x2e0] sm:$0xff]
    %v197 = vld [vmem:[#allocation5 + $0x2e8] sm:$0xff]
    %v198 = vld [vmem:[#allocation5 + $0x2f0] sm:$0xff]
    %v199 = vld [vmem:[#allocation5 + $0x2f8] sm:$0xff]
    %v200 = vsub.f32 1.0, %v58
    %v201 = vsub.f32 1.0, %v64
    %v202 = vsub.f32 1.0, %v70
    %v203 = vsub.f32 1.0, %v76
    %v204 = vsub.f32 1.0, %v82
    %v205 = vsub.f32 1.0, %v88
    %v206 = vsub.f32 1.0, %v94
    %v207 = vsub.f32 1.0, %v100
    %v208 = vmul.f32 %v56, %v200
    %v209 = vmul.f32 %v62, %v201
    %v210 = vmul.f32 %v68, %v202
    %v211 = vmul.f32 %v74, %v203
    %v212 = vmul.f32 %v80, %v204
    %v213 = vmul.f32 %v86, %v205
    %v214 = vmul.f32 %v92, %v206
    %v215 = vmul.f32 %v98, %v207
    %v216 = vmul.f32 %v60, %v58
    %v217 = vmul.f32 %v66, %v64
    %v218 = vmul.f32 %v72, %v70
    %v219 = vmul.f32 %v78, %v76
    %v220 = vmul.f32 %v84, %v82
    %v221 = vmul.f32 %v90, %v88
    %v222 = vmul.f32 %v96, %v94
    %v223 = vmul.f32 %v102, %v100
    %v224 = vadd.f32 %v208, %v216
    %v225 = vadd.f32 %v209, %v217
    %v226 = vadd.f32 %v210, %v218
    %v227 = vadd.f32 %v211, %v219
    %v228 = vadd.f32 %v212, %v220
    %v229 = vadd.f32 %v213, %v221
    %v230 = vadd.f32 %v214, %v222
    %v231 = vadd.f32 %v215, %v223
    %232 = vmatprep.subr.mxu0 %v105
    %233 = vmatpush1.msra.mxu0 %v104
    %234 = vmatprep.subr.mxu0 %v111
    %235 = vmatpush1.msra.mxu0 %v110
    %236 = vmatprep.subr.mxu0 %v117
    %237 = vmatpush1.msra.mxu0 %v116
    %238 = vmatprep.subr.mxu0 %v123
    %239 = vmatpush1.msra.mxu0 %v122
    %240 = vmatprep.subr.mxu0 %v129
    %241 = vmatpush1.msra.mxu0 %v128
    %242 = vmatprep.subr.mxu0 %v135
    %243 = vmatpush1.msra.mxu0 %v134
    %244 = vmatprep.subr.mxu0 %v141
    %245 = vmatpush1.msra.mxu0 %v140
    %246 = vmatprep.subr.mxu0 %v147
    %247 = vmatpush1.msra.mxu0 %v146
    %248 = vmatprep.subr.mxu0 %v153
    %249 = vmatpush1.msra.mxu0 %v152
    %250 = vmatprep.subr.mxu0 %v159
    %251 = vmatpush1.msra.mxu0 %v158
    %252 = vmatprep.subr.mxu0 %v165
    %253 = vmatpush1.msra.mxu0 %v164
    %254 = vmatprep.subr.mxu0 %v171
    %255 = vmatpush1.msra.mxu0 %v170
    %256 = vmatprep.subr.mxu0 %v177
    %257 = vmatpush1.msra.mxu0 %v176
    %258 = vmatprep.subr.mxu0 %v183
    %259 = vmatpush1.msra.mxu0 %v182
    %260 = vmatprep.subr.mxu0 %v189
    %261 = vmatpush1.msra.mxu0 %v188
    %262 = vmatprep.subr.mxu0 %v195
    %263 = vmatpush1.msra.mxu0 %v194
    %264 = vmatprep.subr.mxu0 0.0
    %265 = vmatpush1.msra.mxu0 0.0
    %266 = vmatprep.subr.mxu0 0.0
    %267 = vmatpush1.msra.mxu0 0.0
    %268 = vmatprep.subr.mxu0 0.0
    %269 = vmatpush1.msra.mxu0 0.0
    %270 = vmatprep.subr.mxu0 0.0
    %271 = vmatpush1.msra.mxu0 0.0
    %272 = vmatprep.subr.mxu0 0.0
    %273 = vmatpush1.msra.mxu0 0.0
    %274 = vmatprep.subr.mxu0 0.0
    %275 = vmatpush1.msra.mxu0 0.0
    %276 = vmatprep.subr.mxu0 0.0
    %277 = vmatpush1.msra.mxu0 0.0
    %278 = vmatprep.subr.mxu0 0.0
    %279 = vmatpush1.msra.mxu0 0.0
    %280 = vmatprep.subr.mxu0 0.0
    %281 = vmatpush1.msra.mxu0 0.0
    %282 = vmatprep.subr.mxu0 0.0
    %283 = vmatpush1.msra.mxu0 0.0
    %284 = vmatprep.subr.mxu0 0.0
    %285 = vmatpush1.msra.mxu0 0.0
    %286 = vmatprep.subr.mxu0 0.0
    %287 = vmatpush1.msra.mxu0 0.0
    %288 = vmatprep.subr.mxu0 0.0
    %289 = vmatpush1.msra.mxu0 0.0
    %290 = vmatprep.subr.mxu0 0.0
    %291 = vmatpush1.msra.mxu0 0.0
    %292 = vmatprep.subr.mxu0 0.0
    %293 = vmatpush1.msra.mxu0 0.0
    %294 = vmatprep.subr.mxu0 0.0
    %295 = vmatpush1.msra.mxu0 0.0
    %296 = vmatprep.mubr.f32.mxu0 0.0
    %297 = vmatmul.mubr.f32.gmra.mrb[0].mxu0 %v224
    %v298 = vpop.f32.mrb[0].mxu0
    %v299 = vadd.f32 0.0, %v298
    %v300 = vpop.f32.mrb[0].mxu0
    %v301 = vadd.f32 0.0, %v300
    %302 = vmatprep.mubr.f32.mxu0 0.0
    %303 = vmatmul.mubr.f32.gmra.mrb[0].mxu0 %v225
    %v304 = vpop.f32.mrb[0].mxu0
    %v305 = vadd.f32 0.0, %v304
    %v306 = vpop.f32.mrb[0].mxu0
    %v307 = vadd.f32 0.0, %v306
    %308 = vmatprep.mubr.f32.mxu0 0.0
    %309 = vmatmul.mubr.f32.gmra.mrb[0].mxu0 %v226
    %v310 = vpop.f32.mrb[0].mxu0
    %v311 = vadd.f32 0.0, %v310
    %v312 = vpop.f32.mrb[0].mxu0
    %v313 = vadd.f32 0.0, %v312
    %314 = vmatprep.mubr.f32.mxu0 0.0
    %315 = vmatmul.mubr.f32.gmra.mrb[0].mxu0 %v227
    %v316 = vpop.f32.mrb[0].mxu0
    %v317 = vadd.f32 0.0, %v316
    %v318 = vpop.f32.mrb[0].mxu0
    %v319 = vadd.f32 0.0, %v318
    %320 = vmatprep.mubr.f32.mxu0 0.0
    %321 = vmatmul.mubr.f32.gmra.mrb[0].mxu0 %v228
    %v322 = vpop.f32.mrb[0].mxu0
    %v323 = vadd.f32 0.0, %v322
    %v324 = vpop.f32.mrb[0].mxu0
    %v325 = vadd.f32 0.0, %v324
    %326 = vmatprep.mubr.f32.mxu0 0.0
    %327 = vmatmul.mubr.f32.gmra.mrb[0].mxu0 %v229
    %v328 = vpop.f32.mrb[0].mxu0
    %v329 = vadd.f32 0.0, %v328
    %v330 = vpop.f32.mrb[0].mxu0
    %v331 = vadd.f32 0.0, %v330
    %332 = vmatprep.mubr.f32.mxu0 0.0
    %333 = vmatmul.mubr.f32.gmra.mrb[0].mxu0 %v230
    %v334 = vpop.f32.mrb[0].mxu0
    %v335 = vadd.f32 0.0, %v334
    %v336 = vpop.f32.mrb[0].mxu0
    %v337 = vadd.f32 0.0, %v336
    %338 = vmatprep.mubr.f32.mxu0 0.0
    %339 = vmatmul.mubr.f32.gmra.mrb[0].mxu0 %v231
    %v340 = vpop.f32.mrb[0].mxu0
    %v341 = vadd.f32 0.0, %v340
    %v342 = vpop.f32.mrb[0].mxu0
    %v343 = vadd.f32 0.0, %v342
    %344 = vdwg.mxu0
    %v345 = vmax.f32 %v299, 0.0
    %v346 = vmax.f32 %v301, 0.0
    %v347 = vmax.f32 %v305, 0.0
    %v348 = vmax.f32 %v307, 0.0
    %v349 = vmax.f32 %v311, 0.0
    %v350 = vmax.f32 %v313, 0.0
    %v351 = vmax.f32 %v317, 0.0
    %v352 = vmax.f32 %v319, 0.0
    %v353 = vmax.f32 %v323, 0.0
    %v354 = vmax.f32 %v325, 0.0
    %v355 = vmax.f32 %v329, 0.0
    %v356 = vmax.f32 %v331, 0.0
    %v357 = vmax.f32 %v335, 0.0
    %v358 = vmax.f32 %v337, 0.0
    %v359 = vmax.f32 %v341, 0.0
    %v360 = vmax.f32 %v343, 0.0
    %v361 = vmax.f32 %v345, %v346
    %v362 = vmax.f32 %v347, %v348
    %v363 = vmax.f32 %v349, %v350
    %v364 = vmax.f32 %v351, %v352
    %v365 = vmax.f32 %v353, %v354
    %v366 = vmax.f32 %v355, %v356
    %v367 = vmax.f32 %v357, %v358
    %v368 = vmax.f32 %v359, %v360
    %369 = vmatprep.subr.mxu0 %v107
    %370 = vmatpush1.msra.mxu0 %v106
    %371 = vmatprep.subr.mxu0 %v113
    %372 = vmatpush1.msra.mxu0 %v112
    %373 = vmatprep.subr.mxu0 %v119
    %374 = vmatpush1.msra.mxu0 %v118
    %375 = vmatprep.subr.mxu0 %v125
    %376 = vmatpush1.msra.mxu0 %v124
    %377 = vmatprep.subr.mxu0 %v131
    %378 = vmatpush1.msra.mxu0 %v130
    %379 = vmatprep.subr.mxu0 %v137
    %380 = vmatpush1.msra.mxu0 %v136
    %381 = vmatprep.subr.mxu0 %v143
    %382 = vmatpush1.msra.mxu0 %v142
    %383 = vmatprep.subr.mxu0 %v149
    %384 = vmatpush1.msra.mxu0 %v148
    %385 = vmatprep.subr.mxu0 %v155
    %386 = vmatpush1.msra.mxu0 %v154
    %387 = vmatprep.subr.mxu0 %v161
    %388 = vmatpush1.msra.mxu0 %v160
    %389 = vmatprep.subr.mxu0 %v167
    %390 = vmatpush1.msra.mxu0 %v166
    %391 = vmatprep.subr.mxu0 %v173
    %392 = vmatpush1.msra.mxu0 %v172
    %393 = vmatprep.subr.mxu0 %v179
    %394 = vmatpush1.msra.mxu0 %v178
    %395 = vmatprep.subr.mxu0 %v185
    %396 = vmatpush1.msra.mxu0 %v184
    %397 = vmatprep.subr.mxu0 %v191
    %398 = vmatpush1.msra.mxu0 %v190
    %399 = vmatprep.subr.mxu0 %v197
    %400 = vmatpush1.msra.mxu0 %v196
    %401 = vmatprep.subr.mxu0 0.0
    %402 = vmatpush1.msra.mxu0 0.0
    %403 = vmatprep.subr.mxu0 0.0
    %404 = vmatpush1.msra.mxu0 0.0
    %405 = vmatprep.subr.mxu0 0.0
    %406 = vmatpush1.msra.mxu0 0.0
    %407 = vmatprep.subr.mxu0 0.0
    %408 = vmatpush1.msra.mxu0 0.0
    %409 = vmatprep.subr.mxu0 0.0
    %410 = vmatpush1.msra.mxu0 0.0
    %411 = vmatprep.subr.mxu0 0.0
    %412 = vmatpush1.msra.mxu0 0.0
    %413 = vmatprep.subr.mxu0 0.0
    %414 = vmatpush1.msra.mxu0 0.0
    %415 = vmatprep.subr.mxu0 0.0
    %416 = vmatpush1.msra.mxu0 0.0
    %417 = vmatprep.subr.mxu0 0.0
    %418 = vmatpush1.msra.mxu0 0.0
    %419 = vmatprep.subr.mxu0 0.0
    %420 = vmatpush1.msra.mxu0 0.0
    %421 = vmatprep.subr.mxu0 0.0
    %422 = vmatpush1.msra.mxu0 0.0
    %423 = vmatprep.subr.mxu0 0.0
    %424 = vmatpush1.msra.mxu0 0.0
    %425 = vmatprep.subr.mxu0 0.0
    %426 = vmatpush1.msra.mxu0 0.0
    %427 = vmatprep.subr.mxu0 0.0
    %428 = vmatpush1.msra.mxu0 0.0
    %429 = vmatprep.subr.mxu0 0.0
    %430 = vmatpush1.msra.mxu0 0.0
    %431 = vmatprep.subr.mxu0 0.0
    %432 = vmatpush1.msra.mxu0 0.0
    %433 = vmatprep.mubr.f32.mxu0 0.0
    %434 = vmatmul.mubr.f32.gmra.mrb[0].mxu0 %v361
    %v435 = vpop.f32.mrb[0].mxu0
    %v436 = vadd.f32 0.0, %v435
    %v437 = vpop.f32.mrb[0].mxu0
    %v438 = vadd.f32 0.0, %v437
    %439 = vmatprep.mubr.f32.mxu0 0.0
    %440 = vmatmul.mubr.f32.gmra.mrb[0].mxu0 %v362
    %v441 = vpop.f32.mrb[0].mxu0
    %v442 = vadd.f32 0.0, %v441
    %v443 = vpop.f32.mrb[0].mxu0
    %v444 = vadd.f32 0.0, %v443
    %445 = vmatprep.mubr.f32.mxu0 0.0
    %446 = vmatmul.mubr.f32.gmra.mrb[0].mxu0 %v363
    %v447 = vpop.f32.mrb[0].mxu0
    %v448 = vadd.f32 0.0, %v447
    %v449 = vpop.f32.mrb[0].mxu0
    %v450 = vadd.f32 0.0, %v449
    %451 = vmatprep.mubr.f32.mxu0 0.0
    %452 = vmatmul.mubr.f32.gmra.mrb[0].mxu0 %v364
    %v453 = vpop.f32.mrb[0].mxu0
    %v454 = vadd.f32 0.0, %v453
    %v455 = vpop.f32.mrb[0].mxu0
    %v456 = vadd.f32 0.0, %v455
    %457 = vmatprep.mubr.f32.mxu0 0.0
    %458 = vmatmul.mubr.f32.gmra.mrb[0].mxu0 %v365
    %v459 = vpop.f32.mrb[0].mxu0
    %v460 = vadd.f32 0.0, %v459
    %v461 = vpop.f32.mrb[0].mxu0
    %v462 = vadd.f32 0.0, %v461
    %463 = vmatprep.mubr.f32.mxu0 0.0
    %464 = vmatmul.mubr.f32.gmra.mrb[0].mxu0 %v366
    %v465 = vpop.f32.mrb[0].mxu0
    %v466 = vadd.f32 0.0, %v465
    %v467 = vpop.f32.mrb[0].mxu0
    %v468 = vadd.f32 0.0, %v467
    %469 = vmatprep.mubr.f32.mxu0 0.0
    %470 = vmatmul.mubr.f32.gmra.mrb[0].mxu0 %v367
    %v471 = vpop.f32.mrb[0].mxu0
    %v472 = vadd.f32 0.0, %v471
    %v473 = vpop.f32.mrb[0].mxu0
    %v474 = vadd.f32 0.0, %v473
    %475 = vmatprep.mubr.f32.mxu0 0.0
    %476 = vmatmul.mubr.f32.gmra.mrb[0].mxu0 %v368
    %v477 = vpop.f32.mrb[0].mxu0
    %v478 = vadd.f32 0.0, %v477
    %v479 = vpop.f32.mrb[0].mxu0
    %v480 = vadd.f32 0.0, %v479
    %481 = vdwg.mxu0
    %482 = vmatprep.subr.mxu0 %v109
    %483 = vmatpush1.msra.mxu0 %v108
    %484 = vmatprep.subr.mxu0 %v115
    %485 = vmatpush1.msra.mxu0 %v114
    %486 = vmatprep.subr.mxu0 %v121
    %487 = vmatpush1.msra.mxu0 %v120
    %488 = vmatprep.subr.mxu0 %v127
    %489 = vmatpush1.msra.mxu0 %v126
    %490 = vmatprep.subr.mxu0 %v133
    %491 = vmatpush1.msra.mxu0 %v132
    %492 = vmatprep.subr.mxu0 %v139
    %493 = vmatpush1.msra.mxu0 %v138
    %494 = vmatprep.subr.mxu0 %v145
    %495 = vmatpush1.msra.mxu0 %v144
    %496 = vmatprep.subr.mxu0 %v151
    %497 = vmatpush1.msra.mxu0 %v150
    %498 = vmatprep.subr.mxu0 %v157
    %499 = vmatpush1.msra.mxu0 %v156
    %500 = vmatprep.subr.mxu0 %v163
    %501 = vmatpush1.msra.mxu0 %v162
    %502 = vmatprep.subr.mxu0 %v169
    %503 = vmatpush1.msra.mxu0 %v168
    %504 = vmatprep.subr.mxu0 %v175
    %505 = vmatpush1.msra.mxu0 %v174
    %506 = vmatprep.subr.mxu0 %v181
    %507 = vmatpush1.msra.mxu0 %v180
    %508 = vmatprep.subr.mxu0 %v187
    %509 = vmatpush1.msra.mxu0 %v186
    %510 = vmatprep.subr.mxu0 %v193
    %511 = vmatpush1.msra.mxu0 %v192
    %512 = vmatprep.subr.mxu0 %v199
    %513 = vmatpush1.msra.mxu0 %v198
    %514 = vmatprep.subr.mxu0 0.0
    %515 = vmatpush1.msra.mxu0 0.0
    %516 = vmatprep.subr.mxu0 0.0
    %517 = vmatpush1.msra.mxu0 0.0
    %518 = vmatprep.subr.mxu0 0.0
    %519 = vmatpush1.msra.mxu0 0.0
    %520 = vmatprep.subr.mxu0 0.0
    %521 = vmatpush1.msra.mxu0 0.0
    %522 = vmatprep.subr.mxu0 0.0
    %523 = vmatpush1.msra.mxu0 0.0
    %524 = vmatprep.subr.mxu0 0.0
    %525 = vmatpush1.msra.mxu0 0.0
    %526 = vmatprep.subr.mxu0 0.0
    %527 = vmatpush1.msra.mxu0 0.0
    %528 = vmatprep.subr.mxu0 0.0
    %529 = vmatpush1.msra.mxu0 0.0
    %530 = vmatprep.subr.mxu0 0.0
    %531 = vmatpush1.msra.mxu0 0.0
    %532 = vmatprep.subr.mxu0 0.0
    %533 = vmatpush1.msra.mxu0 0.0
    %534 = vmatprep.subr.mxu0 0.0
    %535 = vmatpush1.msra.mxu0 0.0
    %536 = vmatprep.subr.mxu0 0.0
    %537 = vmatpush1.msra.mxu0 0.0
    %538 = vmatprep.subr.mxu0 0.0
    %539 = vmatpush1.msra.mxu0 0.0
    %540 = vmatprep.subr.mxu0 0.0
    %541 = vmatpush1.msra.mxu0 0.0
    %542 = vmatprep.subr.mxu0 0.0
    %543 = vmatpush1.msra.mxu0 0.0
    %544 = vmatprep.subr.mxu0 0.0
    %545 = vmatpush1.msra.mxu0 0.0
    %546 = vmatprep.mubr.f32.mxu0 0.0
    %547 = vmatmul.mubr.f32.gmra.mrb[0].mxu0 %v361
    %v548 = vpop.f32.mrb[0].mxu0
    %v549 = vadd.f32 0.0, %v548
    %v550 = vpop.f32.mrb[0].mxu0
    %v551 = vadd.f32 0.0, %v550
    %552 = vmatprep.mubr.f32.mxu0 0.0
    %553 = vmatmul.mubr.f32.gmra.mrb[0].mxu0 %v362
    %v554 = vpop.f32.mrb[0].mxu0
    %v555 = vadd.f32 0.0, %v554
    %v556 = vpop.f32.mrb[0].mxu0
    %v557 = vadd.f32 0.0, %v556
    %558 = vmatprep.mubr.f32.mxu0 0.0
    %559 = vmatmul.mubr.f32.gmra.mrb[0].mxu0 %v363
    %v560 = vpop.f32.mrb[0].mxu0
    %v561 = vadd.f32 0.0, %v560
    %v562 = vpop.f32.mrb[0].mxu0
    %v563 = vadd.f32 0.0, %v562
    %564 = vmatprep.mubr.f32.mxu0 0.0
    %565 = vmatmul.mubr.f32.gmra.mrb[0].mxu0 %v364
    %v566 = vpop.f32.mrb[0].mxu0
    %v567 = vadd.f32 0.0, %v566
    %v568 = vpop.f32.mrb[0].mxu0
    %v569 = vadd.f32 0.0, %v568
    %570 = vmatprep.mubr.f32.mxu0 0.0
    %571 = vmatmul.mubr.f32.gmra.mrb[0].mxu0 %v365
    %v572 = vpop.f32.mrb[0].mxu0
    %v573 = vadd.f32 0.0, %v572
    %v574 = vpop.f32.mrb[0].mxu0
    %v575 = vadd.f32 0.0, %v574
    %576 = vmatprep.mubr.f32.mxu0 0.0
    %577 = vmatmul.mubr.f32.gmra.mrb[0].mxu0 %v366
    %v578 = vpop.f32.mrb[0].mxu0
    %v579 = vadd.f32 0.0, %v578
    %v580 = vpop.f32.mrb[0].mxu0
    %v581 = vadd.f32 0.0, %v580
    %582 = vmatprep.mubr.f32.mxu0 0.0
    %583 = vmatmul.mubr.f32.gmra.mrb[0].mxu0 %v367
    %v584 = vpop.f32.mrb[0].mxu0
    %v585 = vadd.f32 0.0, %v584
    %v586 = vpop.f32.mrb[0].mxu0
    %v587 = vadd.f32 0.0, %v586
    %588 = vmatprep.mubr.f32.mxu0 0.0
    %589 = vmatmul.mubr.f32.gmra.mrb[0].mxu0 %v368
    %v590 = vpop.f32.mrb[0].mxu0
    %v591 = vadd.f32 0.0, %v590
    %v592 = vpop.f32.mrb[0].mxu0
    %v593 = vadd.f32 0.0, %v592
    %594 = vdwg.mxu0
    %v595 = vmax.f32 %v436, 0.0
    %v596 = vmax.f32 %v438, 0.0
    %v597 = vmax.f32 %v549, 0.0
    %v598 = vmax.f32 %v551, 0.0
    %v599 = vmax.f32 %v442, 0.0
    %v600 = vmax.f32 %v444, 0.0
    %v601 = vmax.f32 %v555, 0.0
    %v602 = vmax.f32 %v557, 0.0
    %v603 = vmax.f32 %v448, 0.0
    %v604 = vmax.f32 %v450, 0.0
    %v605 = vmax.f32 %v561, 0.0
    %v606 = vmax.f32 %v563, 0.0
    %v607 = vmax.f32 %v454, 0.0
    %v608 = vmax.f32 %v456, 0.0
    %v609 = vmax.f32 %v567, 0.0
    %v610 = vmax.f32 %v569, 0.0
    %v611 = vmax.f32 %v460, 0.0
    %v612 = vmax.f32 %v462, 0.0
    %v613 = vmax.f32 %v573, 0.0
    %v614 = vmax.f32 %v575, 0.0
    %v615 = vmax.f32 %v466, 0.0
    %v616 = vmax.f32 %v468, 0.0
    %v617 = vmax.f32 %v579, 0.0
    %v618 = vmax.f32 %v581, 0.0
    %v619 = vmax.f32 %v472, 0.0
    %v620 = vmax.f32 %v474, 0.0
    %v621 = vmax.f32 %v585, 0.0
    %v622 = vmax.f32 %v587, 0.0
    %v623 = vmax.f32 %v478, 0.0
    %v624 = vmax.f32 %v480, 0.0
    %v625 = vmax.f32 %v591, 0.0
    %v626 = vmax.f32 %v593, 0.0
    %v627 = vmax.f32 %v595, %v597
    %v628 = vmax.f32 %v596, %v598
    %v629 = vmax.f32 %v599, %v601
    %v630 = vmax.f32 %v600, %v602
    %v631 = vmax.f32 %v603, %v605
    %v632 = vmax.f32 %v604, %v606
    %v633 = vmax.f32 %v607, %v609
    %v634 = vmax.f32 %v608, %v610
    %v635 = vmax.f32 %v611, %v613
    %v636 = vmax.f32 %v612, %v614
    %v637 = vmax.f32 %v615, %v617
    %v638 = vmax.f32 %v616, %v618
    %v639 = vmax.f32 %v619, %v621
    %v640 = vmax.f32 %v620, %v622
    %v641 = vmax.f32 %v623, %v625
    %v642 = vmax.f32 %v624, %v626
    %643 = vmax.xlane.f32.xlu0 %v57
    %v644 = vpop.xlane.xlu0 %643
    %645 = vmax.xlane.f32.xlu0 %v63
    %v646 = vpop.xlane.xlu0 %645
    %647 = vmax.xlane.f32.xlu0 %v69
    %v648 = vpop.xlane.xlu0 %647
    %649 = vmax.xlane.f32.xlu0 %v75
    %v650 = vpop.xlane.xlu0 %649
    %651 = vmax.xlane.f32.xlu0 %v81
    %v652 = vpop.xlane.xlu0 %651
    %653 = vmax.xlane.f32.xlu0 %v87
    %v654 = vpop.xlane.xlu0 %653
    %655 = vmax.xlane.f32.xlu0 %v93
    %v656 = vpop.xlane.xlu0 %655
    %657 = vmax.xlane.f32.xlu0 %v99
    %v658 = vpop.xlane.xlu0 %657
    %v659 = vsub.f32 %v57, %v644
    %v660 = vsub.f32 %v63, %v646
    %v661 = vsub.f32 %v69, %v648
    %v662 = vsub.f32 %v75, %v650
    %v663 = vsub.f32 %v81, %v652
    %v664 = vsub.f32 %v87, %v654
    %v665 = vsub.f32 %v93, %v656
    %v666 = vsub.f32 %v99, %v658
    %v667 = vmul.f32 %v659, 1.442695
    %v668 = vpow.pop %v667
    %v669 = vmul.f32 %v660, 1.442695
    %v670 = vpow.pop %v669
    %v671 = vmul.f32 %v661, 1.442695
    %v672 = vpow.pop %v671
    %v673 = vmul.f32 %v662, 1.442695
    %v674 = vpow.pop %v673
    %v675 = vmul.f32 %v663, 1.442695
    %v676 = vpow.pop %v675
    %v677 = vmul.f32 %v664, 1.442695
    %v678 = vpow.pop %v677
    %v679 = vmul.f32 %v665, 1.442695
    %v680 = vpow.pop %v679
    %v681 = vmul.f32 %v666, 1.442695
    %v682 = vpow.pop %v681
    %683 = vadd.xlane.f32.xlu0 %v668
    %v684 = vpop.xlane.xlu0 %683
    %685 = vadd.xlane.f32.xlu0 %v670
    %v686 = vpop.xlane.xlu0 %685
    %687 = vadd.xlane.f32.xlu0 %v672
    %v688 = vpop.xlane.xlu0 %687
    %689 = vadd.xlane.f32.xlu0 %v674
    %v690 = vpop.xlane.xlu0 %689
    %691 = vadd.xlane.f32.xlu0 %v676
    %v692 = vpop.xlane.xlu0 %691
    %693 = vadd.xlane.f32.xlu0 %v678
    %v694 = vpop.xlane.xlu0 %693
    %695 = vadd.xlane.f32.xlu0 %v680
    %v696 = vpop.xlane.xlu0 %695
    %697 = vadd.xlane.f32.xlu0 %v682
    %v698 = vpop.xlane.xlu0 %697
    %v699 = vrcp.pop %v684
    %v700 = vmul.f32 %v668, %v699
    %v701 = vrcp.pop %v686
    %v702 = vmul.f32 %v670, %v701
    %v703 = vrcp.pop %v688
    %v704 = vmul.f32 %v672, %v703
    %v705 = vrcp.pop %v690
    %v706 = vmul.f32 %v674, %v705
    %v707 = vrcp.pop %v692
    %v708 = vmul.f32 %v676, %v707
    %v709 = vrcp.pop %v694
    %v710 = vmul.f32 %v678, %v709
    %v711 = vrcp.pop %v696
    %v712 = vmul.f32 %v680, %v711
    %v713 = vrcp.pop %v698
    %v714 = vmul.f32 %v682, %v713
    %v715 = vmul.f32 %v700, %v200
    %v716 = vmul.f32 %v702, %v201
    %v717 = vmul.f32 %v704, %v202
    %v718 = vmul.f32 %v706, %v203
    %v719 = vmul.f32 %v708, %v204
    %v720 = vmul.f32 %v710, %v205
    %v721 = vmul.f32 %v712, %v206
    %v722 = vmul.f32 %v714, %v207
    %v723 = vld [vmem:[#allocation7] sm:$0xff]
    %v724 = vld [vmem:[#allocation7 + $0x8] sm:$0xff]
    %v725 = vld [vmem:[#allocation7 + $0x10] sm:$0xff]
    %v726 = vld [vmem:[#allocation7 + $0x18] sm:$0xff]
    %v727 = vld [vmem:[#allocation7 + $0x20] sm:$0xff]
    %v728 = vld [vmem:[#allocation7 + $0x28] sm:$0xff]
    %v729 = vld [vmem:[#allocation7 + $0x30] sm:$0xff]
    %v730 = vld [vmem:[#allocation7 + $0x38] sm:$0xff]
    %v731 = vld [vmem:[#allocation7 + $0x40] sm:$0xff]
    %v732 = vld [vmem:[#allocation7 + $0x48] sm:$0xff]
    %v733 = vld [vmem:[#allocation7 + $0x50] sm:$0xff]
    %v734 = vld [vmem:[#allocation7 + $0x58] sm:$0xff]
    %v735 = vld [vmem:[#allocation7 + $0x60] sm:$0xff]
    %v736 = vld [vmem:[#allocation7 + $0x68] sm:$0xff]
    %v737 = vld [vmem:[#allocation7 + $0x70] sm:$0xff]
    %v738 = vld [vmem:[#allocation7 + $0x78] sm:$0xff]
    %v739 = vld [vmem:[#allocation7 + $0x80] sm:$0xff]
    %v740 = vld [vmem:[#allocation7 + $0x88] sm:$0xff]
    %v741 = vld [vmem:[#allocation7 + $0x90] sm:$0xff]
    %v742 = vld [vmem:[#allocation7 + $0x98] sm:$0xff]
    %v743 = vld [vmem:[#allocation7 + $0xa0] sm:$0xff]
    %v744 = vld [vmem:[#allocation7 + $0xa8] sm:$0xff]
    %v745 = vld [vmem:[#allocation7 + $0xb0] sm:$0xff]
    %v746 = vld [vmem:[#allocation7 + $0xb8] sm:$0xff]
    %v747 = vld [vmem:[#allocation7 + $0xc0] sm:$0xff]
    %v748 = vld [vmem:[#allocation7 + $0xc8] sm:$0xff]
    %v749 = vld [vmem:[#allocation7 + $0xd0] sm:$0xff]
    %v750 = vld [vmem:[#allocation7 + $0xd8] sm:$0xff]
    %v751 = vld [vmem:[#allocation7 + $0xe0] sm:$0xff]
    %v752 = vld [vmem:[#allocation7 + $0xe8] sm:$0xff]
    %v753 = vld [vmem:[#allocation7 + $0xf0] sm:$0xff]
    %v754 = vld [vmem:[#allocation7 + $0xf8] sm:$0xff]
    %v755 = vld [vmem:[#allocation7 + $0x100] sm:$0xff]
    %v756 = vld [vmem:[#allocation7 + $0x108] sm:$0xff]
    %v757 = vld [vmem:[#allocation7 + $0x110] sm:$0xff]
    %v758 = vld [vmem:[#allocation7 + $0x118] sm:$0xff]
    %v759 = vld [vmem:[#allocation7 + $0x120] sm:$0xff]
    %v760 = vld [vmem:[#allocation7 + $0x128] sm:$0xff]
    %v761 = vld [vmem:[#allocation7 + $0x130] sm:$0xff]
    %v762 = vld [vmem:[#allocation7 + $0x138] sm:$0xff]
    %v763 = vld [vmem:[#allocation7 + $0x140] sm:$0xff]
    %v764 = vld [vmem:[#allocation7 + $0x148] sm:$0xff]
    %v765 = vld [vmem:[#allocation7 + $0x150] sm:$0xff]
    %v766 = vld [vmem:[#allocation7 + $0x158] sm:$0xff]
    %v767 = vld [vmem:[#allocation7 + $0x160] sm:$0xff]
    %v768 = vld [vmem:[#allocation7 + $0x168] sm:$0xff]
    %v769 = vld [vmem:[#allocation7 + $0x170] sm:$0xff]
    %v770 = vld [vmem:[#allocation7 + $0x178] sm:$0xff]
    %v771 = vmul.f32 %v58, %v61
    %v772 = vmul.f32 %v64, %v67
    %v773 = vmul.f32 %v70, %v73
    %v774 = vmul.f32 %v76, %v79
    %v775 = vmul.f32 %v82, %v85
    %v776 = vmul.f32 %v88, %v91
    %v777 = vmul.f32 %v94, %v97
    %v778 = vmul.f32 %v100, %v103
    %779 = vmatprep.subr.mxu0 0.0
    %780 = vmatpush1.msra.mxu0 %v723
    %781 = vmatprep.subr.mxu0 0.0
    %782 = vmatpush1.msra.mxu0 %v724
    %783 = vmatprep.subr.mxu0 0.0
    %784 = vmatpush1.msra.mxu0 %v725
    %785 = vmatprep.subr.mxu0 0.0
    %786 = vmatpush1.msra.mxu0 %v726
    %787 = vmatprep.subr.mxu0 0.0
    %788 = vmatpush1.msra.mxu0 %v727
    %789 = vmatprep.subr.mxu0 0.0
    %790 = vmatpush1.msra.mxu0 %v728
    %791 = vmatprep.subr.mxu0 0.0
    %792 = vmatpush1.msra.mxu0 %v729
    %793 = vmatprep.subr.mxu0 0.0
    %794 = vmatpush1.msra.mxu0 %v730
    %795 = vmatprep.subr.mxu0 0.0
    %796 = vmatpush1.msra.mxu0 %v731
    %797 = vmatprep.subr.mxu0 0.0
    %798 = vmatpush1.msra.mxu0 %v732
    %799 = vmatprep.subr.mxu0 0.0
    %800 = vmatpush1.msra.mxu0 %v733
    %801 = vmatprep.subr.mxu0 0.0
    %802 = vmatpush1.msra.mxu0 %v734
    %803 = vmatprep.subr.mxu0 0.0
    %804 = vmatpush1.msra.mxu0 %v735
    %805 = vmatprep.subr.mxu0 0.0
    %806 = vmatpush1.msra.mxu0 %v736
    %807 = vmatprep.subr.mxu0 0.0
    %808 = vmatpush1.msra.mxu0 %v737
    %809 = vmatprep.subr.mxu0 0.0
    %810 = vmatpush1.msra.mxu0 %v738
    %811 = vmatprep.subr.mxu0 0.0
    %812 = vmatpush1.msra.mxu0 %v739
    %813 = vmatprep.subr.mxu0 0.0
    %814 = vmatpush1.msra.mxu0 %v740
    %815 = vmatprep.subr.mxu0 0.0
    %816 = vmatpush1.msra.mxu0 %v741
    %817 = vmatprep.subr.mxu0 0.0
    %818 = vmatpush1.msra.mxu0 %v742
    %819 = vmatprep.subr.mxu0 0.0
    %820 = vmatpush1.msra.mxu0 %v743
    %821 = vmatprep.subr.mxu0 0.0
    %822 = vmatpush1.msra.mxu0 %v744
    %823 = vmatprep.subr.mxu0 0.0
    %824 = vmatpush1.msra.mxu0 %v745
    %825 = vmatprep.subr.mxu0 0.0
    %826 = vmatpush1.msra.mxu0 %v746
    %827 = vmatprep.subr.mxu0 0.0
    %828 = vmatpush1.msra.mxu0 %v747
    %829 = vmatprep.subr.mxu0 0.0
    %830 = vmatpush1.msra.mxu0 %v748
    %831 = vmatprep.subr.mxu0 0.0
    %832 = vmatpush1.msra.mxu0 %v749
    %833 = vmatprep.subr.mxu0 0.0
    %834 = vmatpush1.msra.mxu0 %v750
    %835 = vmatprep.subr.mxu0 0.0
    %836 = vmatpush1.msra.mxu0 %v751
    %837 = vmatprep.subr.mxu0 0.0
    %838 = vmatpush1.msra.mxu0 %v752
    %839 = vmatprep.subr.mxu0 0.0
    %840 = vmatpush1.msra.mxu0 %v753
    %841 = vmatprep.subr.mxu0 0.0
    %842 = vmatpush1.msra.mxu0 %v754
    %843 = vmatprep.mubr.f32.mxu0 %v628
    %844 = vmatmul.mubr.f32.gmra.mrb[0].mxu0 %v627
    %v845 = vpop.f32.mrb[0].mxu0
    %v846 = vadd.f32 %v771, %v845
    %v847 = vpop.f32.mrb[0].mxu0
    %848 = vmatprep.mubr.f32.mxu0 %v630
    %849 = vmatmul.mubr.f32.gmra.mrb[0].mxu0 %v629
    %v850 = vpop.f32.mrb[0].mxu0
    %v851 = vadd.f32 %v772, %v850
    %v852 = vpop.f32.mrb[0].mxu0
    %853 = vmatprep.mubr.f32.mxu0 %v632
    %854 = vmatmul.mubr.f32.gmra.mrb[0].mxu0 %v631
    %v855 = vpop.f32.mrb[0].mxu0
    %v856 = vadd.f32 %v773, %v855
    %v857 = vpop.f32.mrb[0].mxu0
    %858 = vmatprep.mubr.f32.mxu0 %v634
    %859 = vmatmul.mubr.f32.gmra.mrb[0].mxu0 %v633
    %v860 = vpop.f32.mrb[0].mxu0
    %v861 = vadd.f32 %v774, %v860
    %v862 = vpop.f32.mrb[0].mxu0
    %863 = vmatprep.mubr.f32.mxu0 %v636
    %864 = vmatmul.mubr.f32.gmra.mrb[0].mxu0 %v635
    %v865 = vpop.f32.mrb[0].mxu0
    %v866 = vadd.f32 %v775, %v865
    %v867 = vpop.f32.mrb[0].mxu0
    %868 = vmatprep.mubr.f32.mxu0 %v638
    %869 = vmatmul.mubr.f32.gmra.mrb[0].mxu0 %v637
    %v870 = vpop.f32.mrb[0].mxu0
    %v871 = vadd.f32 %v776, %v870
    %v872 = vpop.f32.mrb[0].mxu0
    %873 = vmatprep.mubr.f32.mxu0 %v640
    %874 = vmatmul.mubr.f32.gmra.mrb[0].mxu0 %v639
    %v875 = vpop.f32.mrb[0].mxu0
    %v876 = vadd.f32 %v777, %v875
    %v877 = vpop.f32.mrb[0].mxu0
    %878 = vmatprep.mubr.f32.mxu0 %v642
    %879 = vmatmul.mubr.f32.gmra.mrb[0].mxu0 %v641
    %v880 = vpop.f32.mrb[0].mxu0
    %v881 = vadd.f32 %v778, %v880
    %v882 = vpop.f32.mrb[0].mxu0
    %883 = vdwg.mxu0
    %884 = vmatprep.subr.mxu0 0.0
    %885 = vmatpush1.msra.mxu0 %v755
    %886 = vmatprep.subr.mxu0 0.0
    %887 = vmatpush1.msra.mxu0 %v756
    %888 = vmatprep.subr.mxu0 0.0
    %889 = vmatpush1.msra.mxu0 %v757
    %890 = vmatprep.subr.mxu0 0.0
    %891 = vmatpush1.msra.mxu0 %v758
    %892 = vmatprep.subr.mxu0 0.0
    %893 = vmatpush1.msra.mxu0 %v759
    %894 = vmatprep.subr.mxu0 0.0
    %895 = vmatpush1.msra.mxu0 %v760
    %896 = vmatprep.subr.mxu0 0.0
    %897 = vmatpush1.msra.mxu0 %v761
    %898 = vmatprep.subr.mxu0 0.0
    %899 = vmatpush1.msra.mxu0 %v762
    %900 = vmatprep.subr.mxu0 0.0
    %901 = vmatpush1.msra.mxu0 %v763
    %902 = vmatprep.subr.mxu0 0.0
    %903 = vmatpush1.msra.mxu0 %v764
    %904 = vmatprep.subr.mxu0 0.0
    %905 = vmatpush1.msra.mxu0 %v765
    %906 = vmatprep.subr.mxu0 0.0
    %907 = vmatpush1.msra.mxu0 %v766
    %908 = vmatprep.subr.mxu0 0.0
    %909 = vmatpush1.msra.mxu0 %v767
    %910 = vmatprep.subr.mxu0 0.0
    %911 = vmatpush1.msra.mxu0 %v768
    %912 = vmatprep.subr.mxu0 0.0
    %913 = vmatpush1.msra.mxu0 %v769
    %914 = vmatprep.subr.mxu0 0.0
    %915 = vmatpush1.msra.mxu0 %v770
    %916 = vmatprep.subr.mxu0 0.0
    %917 = vmatpush1.msra.mxu0 0.0
    %918 = vmatprep.subr.mxu0 0.0
    %919 = vmatpush1.msra.mxu0 0.0
    %920 = vmatprep.subr.mxu0 0.0
    %921 = vmatpush1.msra.mxu0 0.0
    %922 = vmatprep.subr.mxu0 0.0
    %923 = vmatpush1.msra.mxu0 0.0
    %924 = vmatprep.subr.mxu0 0.0
    %925 = vmatpush1.msra.mxu0 0.0
    %926 = vmatprep.subr.mxu0 0.0
    %927 = vmatpush1.msra.mxu0 0.0
    %928 = vmatprep.subr.mxu0 0.0
    %929 = vmatpush1.msra.mxu0 0.0
    %930 = vmatprep.subr.mxu0 0.0
    %931 = vmatpush1.msra.mxu0 0.0
    %932 = vmatprep.subr.mxu0 0.0
    %933 = vmatpush1.msra.mxu0 0.0
    %934 = vmatprep.subr.mxu0 0.0
    %935 = vmatpush1.msra.mxu0 0.0
    %936 = vmatprep.subr.mxu0 0.0
    %937 = vmatpush1.msra.mxu0 0.0
    %938 = vmatprep.subr.mxu0 0.0
    %939 = vmatpush1.msra.mxu0 0.0
    %940 = vmatprep.subr.mxu0 0.0
    %941 = vmatpush1.msra.mxu0 0.0
    %942 = vmatprep.subr.mxu0 0.0
    %943 = vmatpush1.msra.mxu0 0.0
    %944 = vmatprep.subr.mxu0 0.0
    %945 = vmatpush1.msra.mxu0 0.0
    %946 = vmatprep.subr.mxu0 0.0
    %947 = vmatpush1.msra.mxu0 0.0
    %948 = vmatprep.mubr.f32.mxu0 0.0
    %949 = vmatmul.mubr.f32.gmra.mrb[0].mxu0 %v715
    %v950 = vpop.f32.mrb[0].mxu0
    %v951 = vadd.f32 %v846, %v950
    %v952 = vpop.f32.mrb[0].mxu0
    %953 = vmatprep.mubr.f32.mxu0 0.0
    %954 = vmatmul.mubr.f32.gmra.mrb[0].mxu0 %v716
    %v955 = vpop.f32.mrb[0].mxu0
    %v956 = vadd.f32 %v851, %v955
    %v957 = vpop.f32.mrb[0].mxu0
    %958 = vmatprep.mubr.f32.mxu0 0.0
    %959 = vmatmul.mubr.f32.gmra.mrb[0].mxu0 %v717
    %v960 = vpop.f32.mrb[0].mxu0
    %v961 = vadd.f32 %v856, %v960
    %v962 = vpop.f32.mrb[0].mxu0
    %963 = vmatprep.mubr.f32.mxu0 0.0
    %964 = vmatmul.mubr.f32.gmra.mrb[0].mxu0 %v718
    %v965 = vpop.f32.mrb[0].mxu0
    %v966 = vadd.f32 %v861, %v965
    %v967 = vpop.f32.mrb[0].mxu0
    %968 = vmatprep.mubr.f32.mxu0 0.0
    %969 = vmatmul.mubr.f32.gmra.mrb[0].mxu0 %v719
    %v970 = vpop.f32.mrb[0].mxu0
    %v971 = vadd.f32 %v866, %v970
    %v972 = vpop.f32.mrb[0].mxu0
    %973 = vmatprep.mubr.f32.mxu0 0.0
    %974 = vmatmul.mubr.f32.gmra.mrb[0].mxu0 %v720
    %v975 = vpop.f32.mrb[0].mxu0
    %v976 = vadd.f32 %v871, %v975
    %v977 = vpop.f32.mrb[0].mxu0
    %978 = vmatprep.mubr.f32.mxu0 0.0
    %979 = vmatmul.mubr.f32.gmra.mrb[0].mxu0 %v721
    %v980 = vpop.f32.mrb[0].mxu0
    %v981 = vadd.f32 %v876, %v980
    %v982 = vpop.f32.mrb[0].mxu0
    %983 = vmatprep.mubr.f32.mxu0 0.0
    %984 = vmatmul.mubr.f32.gmra.mrb[0].mxu0 %v722
    %v985 = vpop.f32.mrb[0].mxu0
    %v986 = vadd.f32 %v881, %v985
    %v987 = vpop.f32.mrb[0].mxu0
    %988 = vdwg.mxu0
    %v989 = vadd.f32 %v951, %v59
    %v990 = vadd.f32 %v956, %v65
    %v991 = vadd.f32 %v961, %v71
    %v992 = vadd.f32 %v966, %v77
    %v993 = vadd.f32 %v971, %v83
    %v994 = vadd.f32 %v976, %v89
    %v995 = vadd.f32 %v981, %v95
    %v996 = vadd.f32 %v986, %v101
    %997 = vst [vmem:[#allocation8] sm:$0xff] %v989
    %998 = vst [vmem:[#allocation8 + $0x8] sm:$0xff] %v990
    %999 = vst [vmem:[#allocation8 + $0x10] sm:$0xff] %v991
    %1000 = vst [vmem:[#allocation8 + $0x18] sm:$0xff] %v992
    %1001 = vst [vmem:[#allocation8 + $0x20] sm:$0xff] %v993
    %1002 = vst [vmem:[#allocation8 + $0x28] sm:$0xff] %v994
    %1003 = vst [vmem:[#allocation8 + $0x30] sm:$0xff] %v995
    %1004 = vst [vmem:[#allocation8 + $0x38] sm:$0xff] %v996
    // Predicated region
    $region26: #{tpu_custom_call.1} parent=1 // pred_check
      _
    $region27: #{tpu_custom_call.1} parent=1 // pred_check_branch
      %1006 = sbr.rel (0) target = $region29
    $region28: #{tpu_custom_call.1} parent=1 // pred_region
      %s1008 = ssub.s32 1024, 1024
      %1009 = vsyncadd [#allocation4], %s1008
      %s1010 = sshll.u32 [#allocation8], 4
      %s1011 = int_to_ptr.vmem [resolvable:$true] %s1010
      %1016 = dma.vmem_to_hbm [thread:$0]  %s1011, 1024, %s3, [#allocation4], 128, 128, 8
    $region29: #{tpu_custom_call.1} parent=1 // pred_fallthru
      _
    // Predicated region
    $region30: #{tpu_custom_call.1} parent=1 // pred_check
      _
    $region31: #{tpu_custom_call.1} parent=1 // pred_check_branch
      %1018 = sbr.rel (0) target = $region33
    $region32: #{tpu_custom_call.1} parent=1 // pred_region
      %1019 = dma.done [#allocation4], 1024
    $region33: #{tpu_custom_call.1} parent=1 // pred_fallthru
      _
    %1020 = vsyncpa [#allocation3], 1
    %1021 = vsyncpa [#allocation6], 1
    %1022 = vsyncpa [#allocation4], 1

</llo_original>
